<compile_context>
chip_gen: v7x
topology: tpu7x:2x2x1
jax: 0.10.0
libtpu: 0.0.40
codegen_flags: <defaults>
</compile_context>

<pallas_src>
import jax
import jax.numpy as jnp
from jax.experimental import pallas as pl
from jax.experimental.pallas import tpu as pltpu


def _fm_kernel(x_ref, v_ref, ws_ref, b_ref, o_ref):
    x = x_ref[...]                        # (TB, N) f32
    v = v_ref[...]                        # (N, K)  f32
    w_row = ws_ref[0:1, :]                # (1, N)  linear weight, row layout
    hs_row = ws_ref[1:2, :]               # (1, N)  0.5 * rowsum(V^2)
    b = b_ref[0, 0]                       # scalar bias from SMEM

    # Single MXU matmul for the interaction term.
    xv = jnp.dot(x, v, preferred_element_type=jnp.float32)            # (TB, K)
    pos = jnp.sum(xv * xv, axis=-1, keepdims=True)                    # (TB, 1)

    # Linear term and -(1/2)*(x^2)@rowsum(V^2) fused on VPU + XLU lane reduce:
    #   sum_n x_n * (w_n - 0.5*s_n*x_n) = x@w - 0.5*(x^2)@s
    lin_minus = jnp.sum(x * (w_row - x * hs_row), axis=-1, keepdims=True)

    o_ref[...] = (lin_minus + b + 0.5 * pos).astype(o_ref.dtype)


def _choose_batch_tile(batch, n_features):
    """Pick a batch tile that keeps double-buffered x comfortably in VMEM."""
    per_buffer_budget = 8 * 1024 * 1024              # bytes of x per pipeline buffer
    tb = max(8, per_buffer_budget // (n_features * 4))
    tb = min(tb, 1024, batch)                        # 512-1024 rows ~ HBM roofline
    if tb != batch:
        tb = max(8, (tb // 8) * 8)                   # (8,128) sublane rule
    return tb


def factorization_machine(x, w, b, v):
    """x: [B, N], w: [N, 1], b: [1, 1], v: [N, K] -> [B, 1]"""
    B, N = x.shape
    K = v.shape[1]

    # Precompute fused row weights in the wrapper: [w ; 0.5 * rowsum(V^2)].
    s = jnp.sum(v * v, axis=1, keepdims=True)                  # (N, 1)
    ws = jnp.concatenate([w.T, 0.5 * s.T], axis=0)             # (2, N)

    tb = _choose_batch_tile(B, N)
    grid = (pl.cdiv(B, tb),)

    return pl.pallas_call(
        _fm_kernel,
        out_shape=jax.ShapeDtypeStruct((B, 1), jnp.float32),
        grid=grid,
        in_specs=[
            pl.BlockSpec((tb, N), lambda i: (i, 0)),           # x: batch-tiled, pipelined
            pl.BlockSpec((N, K), lambda i: (0, 0)),            # V: VMEM-resident
            pl.BlockSpec((2, N), lambda i: (0, 0)),            # [w; 0.5*rowsum(V^2)]: resident
            pl.BlockSpec(memory_space=pltpu.MemorySpace.SMEM), # bias scalar in SMEM
        ],
        out_specs=pl.BlockSpec((tb, 1), lambda i: (i, 0)),
        compiler_params=pltpu.CompilerParams(
            dimension_semantics=("parallel",),                 # 2x on v7x dual TC
            vmem_limit_bytes=32 * 1024 * 1024,                 # safe on v5e/v6e/v7x
        ),
    )(x, v, ws, b)


def fm_reference(x, w, b, v):
    # Exact original formulation (both MXU matmuls) for verification.
    linear = x @ w + b
    xv = x @ v
    x2v2 = (x * x) @ (v * v)
    interaction = 0.5 * jnp.sum(xv * xv - x2v2, axis=-1, keepdims=True)
    return linear + interaction


if __name__ == "__main__":
    # Small shapes consistent with the module: batch=8, input_features=32, factors=16.
    B, N, K = 8, 32, 16

    key = jax.random.PRNGKey(0)
    kx, kw, kb, kv = jax.random.split(key, 4)

    x = jax.random.normal(kx, (B, N), dtype=jnp.float32)

    # PyTorch-like init: Linear ~ U(-1/sqrt(N), 1/sqrt(N)), V ~ small normal.
    bound = 1.0 / jnp.sqrt(jnp.float32(N))
    w = jax.random.uniform(kw, (N, 1), dtype=jnp.float32, minval=-bound, maxval=bound)
    b = jax.random.uniform(kb, (1, 1), dtype=jnp.float32, minval=-bound, maxval=bound)
    v = 0.01 * jax.random.normal(kv, (N, K), dtype=jnp.float32)

    out = factorization_machine(x, w, b, v)
    out = jax.block_until_ready(out)

    ref = fm_reference(x, w, b, v)
    assert out.shape == (B, 1)
    assert jnp.allclose(out, ref, atol=1e-4, rtol=1e-4), "mismatch vs reference"

    print("KERNEL_OK")
</pallas_src>

<mosaic_0001>
module attributes {stable_mosaic.version = 11 : i64} {
  func.func @_fm_kernel(%arg0: i32, %arg1: memref<8x32xf32, #tpu.memory_space<vmem>>, %arg2: memref<32x16xf32, #tpu.memory_space<vmem>>, %arg3: memref<2x32xf32, #tpu.memory_space<vmem>>, %arg4: memref<1x1xf32, #tpu.memory_space<smem>>, %arg5: memref<8x1xf32, #tpu.memory_space<vmem>>) attributes {dimension_semantics = [#tpu.dimension_semantics<parallel>], iteration_bounds = array<i64: 1>, scalar_prefetch = 0 : i64, scratch_operands = 0 : i64, tpu.core_type = #tpu.core_type<tc>, window_params = [{transform_indices = @transform_0, window_bounds = array<i64: 8, 32>}, {pipeline_mode = #tpu.pipeline_mode<synchronous>, transform_indices = @transform_1, window_bounds = array<i64: 32, 16>}, {pipeline_mode = #tpu.pipeline_mode<synchronous>, transform_indices = @transform_2, window_bounds = array<i64: 2, 32>}, {transform_indices = @transform_3, window_bounds = array<i64: 1, 1>}, {transform_indices = @transform_4, window_bounds = array<i64: 8, 1>}]} {
    %c0 = arith.constant 0 : index
    %c0_0 = arith.constant 0 : index
    %0 = vector.load %arg1[%c0, %c0_0] : memref<8x32xf32, #tpu.memory_space<vmem>>, vector<8x32xf32>
    %c0_1 = arith.constant 0 : index
    %c0_2 = arith.constant 0 : index
    %1 = vector.load %arg2[%c0_1, %c0_2] : memref<32x16xf32, #tpu.memory_space<vmem>>, vector<32x16xf32>
    %c0_3 = arith.constant 0 : index
    %c0_4 = arith.constant 0 : index
    %2 = vector.load %arg3[%c0_3, %c0_4] : memref<2x32xf32, #tpu.memory_space<vmem>>, vector<1x32xf32>
    %c1 = arith.constant 1 : index
    %c0_5 = arith.constant 0 : index
    %3 = vector.load %arg3[%c1, %c0_5] : memref<2x32xf32, #tpu.memory_space<vmem>>, vector<1x32xf32>
    %c0_6 = arith.constant 0 : index
    %c0_7 = arith.constant 0 : index
    %4 = memref.load %arg4[%c0_6, %c0_7] : memref<1x1xf32, #tpu.memory_space<smem>>
    %cst = arith.constant dense<0.000000e+00> : vector<8x16xf32>
    %5 = tpu.matmul %0, %1, %cst {dimension_numbers = #tpu.dot_dimension_numbers<[1], [0], [0], [1], [0, 0, 1, 1], [], []>} : vector<8x32xf32>, vector<32x16xf32>, vector<8x16xf32> -> vector<8x16xf32>
    %6 = arith.mulf %5, %5 : vector<8x16xf32>
    %cst_8 = arith.constant dense<0.000000e+00> : vector<8xf32>
    %7 = vector.multi_reduction <add>, %6, %cst_8 [1] : vector<8x16xf32> to vector<8xf32>
    %8 = vector.shape_cast %7 : vector<8xf32> to vector<8x1xf32>
    %9 = vector.broadcast %3 : vector<1x32xf32> to vector<8x32xf32>
    %10 = arith.mulf %0, %9 : vector<8x32xf32>
    %11 = vector.broadcast %2 : vector<1x32xf32> to vector<8x32xf32>
    %12 = arith.subf %11, %10 : vector<8x32xf32>
    %13 = arith.mulf %0, %12 : vector<8x32xf32>
    %cst_9 = arith.constant dense<0.000000e+00> : vector<8xf32>
    %14 = vector.multi_reduction <add>, %13, %cst_9 [1] : vector<8x32xf32> to vector<8xf32>
    %15 = vector.shape_cast %14 : vector<8xf32> to vector<8x1xf32>
    %16 = vector.broadcast %4 : f32 to vector<8x1xf32>
    %17 = arith.addf %15, %16 : vector<8x1xf32>
    %cst_10 = arith.constant 5.000000e-01 : f32
    %18 = vector.broadcast %cst_10 : f32 to vector<8x1xf32>
    %19 = arith.mulf %18, %8 : vector<8x1xf32>
    %20 = arith.addf %17, %19 : vector<8x1xf32>
    %c0_11 = arith.constant 0 : index
    %c0_12 = arith.constant 0 : index
    %21 = vector.load %arg5[%c0_11, %c0_12] : memref<8x1xf32, #tpu.memory_space<vmem>>, vector<8x1xf32>
    tpu.vector_store %arg5[%c0_11, %c0_12], %20 {strides = array<i32>} : memref<8x1xf32, #tpu.memory_space<vmem>>, vector<8x1xf32>,
    return
  }
  func.func @transform_0(%arg0: i32) -> (i32, i32) {
    %c0_i32 = arith.constant 0 : i32
    %c0_i32_0 = arith.constant 0 : i32
    return %arg0, %c0_i32 : i32, i32
  }
  func.func @transform_1(%arg0: i32) -> (i32, i32) {
    %c0_i32 = arith.constant 0 : i32
    %c0_i32_0 = arith.constant 0 : i32
    %c0_i32_1 = arith.constant 0 : i32
    return %c0_i32, %c0_i32_0 : i32, i32
  }
  func.func @transform_2(%arg0: i32) -> (i32, i32) {
    %c0_i32 = arith.constant 0 : i32
    %c0_i32_0 = arith.constant 0 : i32
    %c0_i32_1 = arith.constant 0 : i32
    return %c0_i32, %c0_i32_0 : i32, i32
  }
  func.func @transform_3(%arg0: i32) -> (i32, i32) {
    %c0_i32 = arith.constant 0 : i32
    %c0_i32_0 = arith.constant 0 : i32
    %c0_i32_1 = arith.constant 0 : i32
    return %c0_i32, %c0_i32_0 : i32, i32
  }
  func.func @transform_4(%arg0: i32) -> (i32, i32) {
    %c0_i32 = arith.constant 0 : i32
    %c0_i32_0 = arith.constant 0 : i32
    return %arg0, %c0_i32 : i32, i32
  }
}

</mosaic_0001>

<llo_original>
// kernel: tpu_custom_call.1
$region0: #{tpu_custom_call.1}
  #allocation0 [shape = 'u32[]', space=smem, size = 0x4, offset = 0x4, fixed_abs, tag = 'smem constant byte address 0x4 - core index']
  #allocation1 [shape = 'u32[144,128]{1,0:T(1,128)}', space=vmem, size = 0x12000, scoped, tag = 'internal scratch']
  #allocation2 [shape = 'f32[1,1]{1,0:T(1,128)S(6)}', space=smem, size = 0x200, scoped, tag = 'scoped memory for tpu_custom_call.1']
  %s0 = inlined_call_operand.vmem [shape: f32[8,32], index: 0, kind: input, shape index: {}]
  %s1 = inlined_call_operand.vmem [shape: f32[32,16], index: 1, kind: input, shape index: {}]
  %s2 = inlined_call_operand.vmem [shape: f32[2,32], index: 2, kind: input, shape index: {}]
  %s3 = inlined_call_operand.<no memory space> [shape: f32[1,1], index: 3, kind: input, shape index: {}]
  %s4 = inlined_call_operand.vmem [shape: f32[8,1], index: 4, kind: output, shape index: {}]
  %s5 = sld [smem:[#allocation0]]
  $region26: #{tpu_custom_call.1} parent=0
    _
  %s7 = ssub.s32 1, %s5
  %s8 = scalar_select 0, %s7, %s5
  %9 = sst [smem:[#allocation2]] %s3
  // Predicated region
  $region2: #{tpu_custom_call.1} parent=0 // pred_check
    _
  $region3: #{tpu_custom_call.1} parent=0 // pred_check_branch
    %11 = sbr.rel (0) target = $region5
  $region4: #{tpu_custom_call.1} parent=0 // pred_region
    _
  $region5: #{tpu_custom_call.1} parent=0 // pred_fallthru
    _
  // Predicated region
  $region6: #{tpu_custom_call.1} parent=0 // pred_check
    _
  $region7: #{tpu_custom_call.1} parent=0 // pred_check_branch
    %13 = sbr.rel (0) target = $region9
  $region8: #{tpu_custom_call.1} parent=0 // pred_region
    _
  $region9: #{tpu_custom_call.1} parent=0 // pred_fallthru
    _
  // Predicated region
  $region10: #{tpu_custom_call.1} parent=0 // pred_check
    _
  $region11: #{tpu_custom_call.1} parent=0 // pred_check_branch
    %15 = sbr.rel (0) target = $region13
  $region12: #{tpu_custom_call.1} parent=0 // pred_region
    _
  $region13: #{tpu_custom_call.1} parent=0 // pred_fallthru
    _
  // Predicated region
  $region14: #{tpu_custom_call.1} parent=0 // pred_check
    _
  $region15: #{tpu_custom_call.1} parent=0 // pred_check_branch
    %17 = sbr.rel (0) target = $region17
  $region16: #{tpu_custom_call.1} parent=0 // pred_region
    _
  $region17: #{tpu_custom_call.1} parent=0 // pred_fallthru
    _
  %v18 = vld [vmem:[%s0] sm:$0xff]
  %v19 = vld [vmem:[%s1] sm:$0xff]
  %v20 = vld [vmem:[%s1 + $0x8] sm:$0xff]
  %v21 = vld [vmem:[%s1 + $0x10] sm:$0xff]
  %v22 = vld [vmem:[%s1 + $0x18] sm:$0xff]
  %v23 = vld [vmem:[%s2] sm:$0x1]
  %v24 = vld [vmem:[%s2 + $0x1] sm:$0x1]
  %s25 = sld [smem:[#allocation2]]
  %vm26 = vcmask 261120
  %v28 = vsel %vm26, %v18, 0
  %30 = vmatprep.subr.mxu0 0.0
  %31 = vmatpush1.msra.mxu0 %v19
  %32 = vmatprep.subr.mxu0 0.0
  %33 = vmatpush1.msra.mxu0 %v20
  %34 = vmatprep.subr.mxu0 0.0
  %35 = vmatpush1.msra.mxu0 %v21
  %36 = vmatprep.subr.mxu0 0.0
  %37 = vmatpush1.msra.mxu0 %v22
  %38 = vmatprep.subr.mxu0 0.0
  %39 = vmatpush1.msra.mxu0 0.0
  %40 = vmatprep.subr.mxu0 0.0
  %41 = vmatpush1.msra.mxu0 0.0
  %42 = vmatprep.subr.mxu0 0.0
  %43 = vmatpush1.msra.mxu0 0.0
  %44 = vmatprep.subr.mxu0 0.0
  %45 = vmatpush1.msra.mxu0 0.0
  %46 = vmatprep.subr.mxu0 0.0
  %47 = vmatpush1.msra.mxu0 0.0
  %48 = vmatprep.subr.mxu0 0.0
  %49 = vmatpush1.msra.mxu0 0.0
  %50 = vmatprep.subr.mxu0 0.0
  %51 = vmatpush1.msra.mxu0 0.0
  %52 = vmatprep.subr.mxu0 0.0
  %53 = vmatpush1.msra.mxu0 0.0
  %54 = vmatprep.subr.mxu0 0.0
  %55 = vmatpush1.msra.mxu0 0.0
  %56 = vmatprep.subr.mxu0 0.0
  %57 = vmatpush1.msra.mxu0 0.0
  %58 = vmatprep.subr.mxu0 0.0
  %59 = vmatpush1.msra.mxu0 0.0
  %60 = vmatprep.subr.mxu0 0.0
  %61 = vmatpush1.msra.mxu0 0.0
  %62 = vmatprep.subr.mxu0 0.0
  %63 = vmatpush1.msra.mxu0 0.0
  %64 = vmatprep.subr.mxu0 0.0
  %65 = vmatpush1.msra.mxu0 0.0
  %66 = vmatprep.subr.mxu0 0.0
  %67 = vmatpush1.msra.mxu0 0.0
  %68 = vmatprep.subr.mxu0 0.0
  %69 = vmatpush1.msra.mxu0 0.0
  %70 = vmatprep.subr.mxu0 0.0
  %71 = vmatpush1.msra.mxu0 0.0
  %72 = vmatprep.subr.mxu0 0.0
  %73 = vmatpush1.msra.mxu0 0.0
  %74 = vmatprep.subr.mxu0 0.0
  %75 = vmatpush1.msra.mxu0 0.0
  %76 = vmatprep.subr.mxu0 0.0
  %77 = vmatpush1.msra.mxu0 0.0
  %78 = vmatprep.subr.mxu0 0.0
  %79 = vmatpush1.msra.mxu0 0.0
  %80 = vmatprep.subr.mxu0 0.0
  %81 = vmatpush1.msra.mxu0 0.0
  %82 = vmatprep.subr.mxu0 0.0
  %83 = vmatpush1.msra.mxu0 0.0
  %84 = vmatprep.subr.mxu0 0.0
  %85 = vmatpush1.msra.mxu0 0.0
  %86 = vmatprep.subr.mxu0 0.0
  %87 = vmatpush1.msra.mxu0 0.0
  %88 = vmatprep.subr.mxu0 0.0
  %89 = vmatpush1.msra.mxu0 0.0
  %90 = vmatprep.subr.mxu0 0.0
  %91 = vmatpush1.msra.mxu0 0.0
  %92 = vmatprep.subr.mxu0 0.0
  %93 = vmatpush1.msra.mxu0 0.0
  %94 = vmatprep.mubr.f32.mxu0 0.0
  %95 = vmatmul.mubr.f32.gmra.mrb[0].mxu0 %v28
  %v96 = vpop.f32.mrb[0].mxu0
  %v97 = vadd.f32 0.0, %v96
  %v98 = vpop.f32.mrb[0].mxu0
  %99 = vdwg.mxu0
  %v100 = vmul.f32 %v97, %v97
  %vm101 = vcmask 130048
  %v102 = vsel %vm101, %v100, 0.0
  %103 = vadd.xlane.f32.xlu0 %v102
  %v104 = vpop.xlane.xlu0 %103
  %v105 = vlaneseq
  %v106 = vshrl.u32 %v105, 7
  %v107 = vsub.s32 0, %v106
  %v108 = vrot.slane %v24, %v107
  %v109 = vmul.f32 %v18, %v108
  %v110 = vlaneseq
  %v111 = vshrl.u32 %v110, 7
  %v112 = vsub.s32 0, %v111
  %v113 = vrot.slane %v23, %v112
  %v114 = vsub.f32 %v113, %v109
  %v115 = vmul.f32 %v18, %v114
  %v116 = vsel %vm26, %v115, 0.0
  %117 = vadd.xlane.f32.xlu0 %v116
  %v118 = vpop.xlane.xlu0 %117
  %v119 = vstv %s25
  %v120 = vadd.f32 %v118, %v119
  %v121 = vmul.f32 %v104, 0.5
  %v122 = vadd.f32 %v120, %v121
  %vm123 = vcmask 7168
  %124 = vst.msk [vmem:[%s4] sm:$0xff] %vm123, %v122
  // Predicated region
  $region18: #{tpu_custom_call.1} parent=0 // pred_check
    _
  $region19: #{tpu_custom_call.1} parent=0 // pred_check_branch
    %126 = sbr.rel (0) target = $region21
  $region20: #{tpu_custom_call.1} parent=0 // pred_region
    _
  $region21: #{tpu_custom_call.1} parent=0 // pred_fallthru
    _
  // Predicated region
  $region22: #{tpu_custom_call.1} parent=0 // pred_check
    _
  $region23: #{tpu_custom_call.1} parent=0 // pred_check_branch
    %128 = sbr.rel (0) target = $region25
  $region24: #{tpu_custom_call.1} parent=0 // pred_region
    _
  $region25: #{tpu_custom_call.1} parent=0 // pred_fallthru
    _

</llo_original>
